<compile_context>
chip_gen: v5e
topology: v5e:2x2
jax: 0.10.0
libtpu: 0.0.40
codegen_flags: <defaults>
</compile_context>

<pallas_src>
import math

import jax
import jax.numpy as jnp
from jax.experimental import pallas as pl
from jax.experimental.pallas import tpu as pltpu


def _round_up(x, m):
    return ((x + m - 1) // m) * m


# ----------------------------------------------------------------------------
# Pallas kernel: fused bilinear resize (two matmuls) + zero padding
#   ah_ref : (tm, H_in)         row tile of A_h   (rows >= H_out are zero)
#   awt_ref: (W_in, W_lane)     A_w^T             (cols >= W_out are zero)
#   img_ref: (1, C*H_in, W_in)  channel-folded image (constant across row axis)
#   out_ref: (1, C, tm, W_lane)
#   t_ref  : (C*H_in, W_lane)   scratch: W-contracted intermediate, computed at
#                               row-tile 0 and reused by later row tiles.
# ----------------------------------------------------------------------------
def resize_pad_kernel(ah_ref, awt_ref, img_ref, out_ref, t_ref):
    C = out_ref.shape[1]
    H_in = img_ref.shape[1] // C

    # Stage 1 (once per image): channel-folded W contraction, lane-dense out.
    @pl.when(pl.program_id(1) == 0)
    def _():
        t_ref[...] = jnp.dot(img_ref[0], awt_ref[...],
                             preferred_element_type=jnp.float32)

    # Stage 2 (every row tile): H contraction per channel (N = W_lane >= 128).
    ah = ah_ref[...]                                     # (tm, H_in)
    for c in range(C):                                   # static unroll (C==3)
        t_c = t_ref[pl.ds(c * H_in, H_in), :]            # (H_in, W_lane)
        out_ref[0, c] = jnp.dot(
            ah, t_c, preferred_element_type=jnp.float32).astype(out_ref.dtype)


# ----------------------------------------------------------------------------
# Glue: build interpolation matrices (PyTorch bilinear, align_corners=False)
# ----------------------------------------------------------------------------
def build_interp_matrix(in_size, out_size, pad_size, dtype=jnp.float32):
    o = jnp.arange(pad_size, dtype=jnp.float32)
    src = (o + 0.5) * (in_size / out_size) - 0.5
    src = jnp.clip(src, 0.0, float(in_size - 1))
    i0 = jnp.floor(src).astype(jnp.int32)
    i1 = jnp.minimum(i0 + 1, in_size - 1)
    frac = src - i0.astype(jnp.float32)
    a = (jax.nn.one_hot(i0, in_size, dtype=jnp.float32) * (1.0 - frac)[:, None]
         + jax.nn.one_hot(i1, in_size, dtype=jnp.float32) * frac[:, None])
    valid = (o < out_size).astype(jnp.float32)
    return (a * valid[:, None]).astype(dtype)


def transformer_forward(images, *, min_size, max_size, stride):
    """Eval-mode Transformer.forward with targets=None.

    Returns (batched_images, targets, scale_factors, image_shapes).
    """
    N, C, H, W = images.shape
    mn, mx = min(H, W), max(H, W)
    scale = min(min_size / mn, max_size / mx)
    if scale != 1:                       # same (exact) check as the module
        H_out = int(round(H * scale))    # Python round(), matching the spec
        W_out = int(round(W * scale))
    else:
        H_out, W_out = H, W
    H_pad = math.ceil(H_out / stride) * stride
    W_pad = math.ceil(W_out / stride) * stride

    # Lane-dense width + row tiling (extra rows/cols are zero, sliced off).
    W_lane = _round_up(W_pad, 128)
    n_rt = -(-H_pad // 256)                      # number of row tiles
    tm = _round_up(-(-H_pad // n_rt), 8)         # row-tile height (mult of 8)
    H_pad_r = n_rt * tm

    a_h = build_interp_matrix(H, H_out, H_pad_r)         # (H_pad_r, H)
    a_wt = build_interp_matrix(W, W_out, W_lane).T       # (W, W_lane)

    images2d = images.reshape(N, C * H, W)               # free, contiguous

    flops = 2 * N * C * (H * W * W_lane + H_pad_r * H * W_lane)
    bytes_accessed = 4 * (N * C * H * W + N * C * H_pad_r * W_lane
                          + H_pad_r * H + W * W_lane)

    out = pl.pallas_call(
        resize_pad_kernel,
        out_shape=jax.ShapeDtypeStruct((N, C, H_pad_r, W_lane), images.dtype),
        grid_spec=pltpu.PrefetchScalarGridSpec(
            num_scalar_prefetch=0,
            grid=(N, n_rt),
            in_specs=[
                pl.BlockSpec((tm, H), lambda n, r: (r, 0)),
                pl.BlockSpec((W, W_lane), lambda n, r: (0, 0)),
                pl.BlockSpec((1, C * H, W), lambda n, r: (n, 0, 0)),
            ],
            out_specs=pl.BlockSpec((1, C, tm, W_lane),
                                   lambda n, r: (n, 0, r, 0)),
            scratch_shapes=[pltpu.VMEM((C * H, W_lane), jnp.float32)],
        ),
        compiler_params=pltpu.CompilerParams(
            dimension_semantics=("parallel", "arbitrary"),
            vmem_limit_bytes=64 * 1024 * 1024),
        cost_estimate=pl.CostEstimate(flops=flops, transcendentals=0,
                                      bytes_accessed=bytes_accessed),
    )(a_h, a_wt, images2d)

    # Slice back to the true batch_images extent (extra rows/cols are zero).
    batched = out[:, :, :H_pad, :W_pad]

    # TODO(synk): training-mode random horizontal flip + target box rescaling
    # (python RNG / dict mutation) has no Pallas-side equivalent; eval path only.
    targets = tuple(None for _ in range(N))
    scale_factors = tuple(float(scale) for _ in range(N))
    image_shapes = [(H_out, W_out)] * N
    return batched, targets, scale_factors, image_shapes


# ----------------------------------------------------------------------------
# Plain-JAX reference (gather-based bilinear, same PyTorch semantics)
# ----------------------------------------------------------------------------
def bilinear_ref(img, h_out, w_out):
    # img: (C, H, W)
    _, H, W = img.shape
    sy = jnp.clip((jnp.arange(h_out) + 0.5) * (H / h_out) - 0.5, 0.0, H - 1)
    sx = jnp.clip((jnp.arange(w_out) + 0.5) * (W / w_out) - 0.5, 0.0, W - 1)
    y0 = jnp.floor(sy).astype(jnp.int32)
    y1 = jnp.minimum(y0 + 1, H - 1)
    fy = (sy - y0)[None, :, None]
    x0 = jnp.floor(sx).astype(jnp.int32)
    x1 = jnp.minimum(x0 + 1, W - 1)
    fx = (sx - x0)[None, None, :]
    top = img[:, y0][:, :, x0] * (1 - fx) + img[:, y0][:, :, x1] * fx
    bot = img[:, y1][:, :, x0] * (1 - fx) + img[:, y1][:, :, x1] * fx
    return top * (1 - fy) + bot * fy


if __name__ == "__main__":
    key = jax.random.PRNGKey(0)
    N, C, H, W = 2, 3, 16, 16
    min_size, max_size, stride = 24, 48, 16  # scale=1.5 -> 24x24, pad to 32x32

    images = jax.random.uniform(key, (N, C, H, W), dtype=jnp.float32)

    out, targets, scale_factors, image_shapes = transformer_forward(
        images, min_size=min_size, max_size=max_size, stride=stride)
    out = jax.block_until_ready(out)

    assert out.shape == (N, C, 32, 32), f"bad output shape {out.shape}"

    # Sanity check against a plain-JAX bilinear reference + zero padding.
    h_out, w_out = image_shapes[0]
    for n in range(N):
        ref = bilinear_ref(images[n], h_out, w_out)
        assert jnp.allclose(out[n, :, :h_out, :w_out], ref, atol=1e-4), \
            "resize mismatch"
    assert jnp.all(out[:, :, h_out:, :] == 0.0), "pad (rows) not zero"
    assert jnp.all(out[:, :, :, w_out:] == 0.0), "pad (cols) not zero"
    assert scale_factors == (1.5, 1.5)
    assert image_shapes == [(24, 24), (24, 24)]
    assert targets == (None, None)

    print("KERNEL_OK")
</pallas_src>

<mosaic_0001>
module attributes {stable_mosaic.version = 11 : i64} {
  func.func @resize_pad_kernel(%arg0: i32, %arg1: i32, %arg2: memref<32x16xf32, #tpu.memory_space<vmem>>, %arg3: memref<16x128xf32, #tpu.memory_space<vmem>>, %arg4: memref<1x48x16xf32, #tpu.memory_space<vmem>>, %arg5: memref<1x3x32x128xf32, #tpu.memory_space<vmem>>, %arg6: memref<48x128xf32, #tpu.memory_space<vmem>>) attributes {dimension_semantics = [#tpu.dimension_semantics<parallel>, #tpu.dimension_semantics<arbitrary>], iteration_bounds = array<i64: 2, 1>, scalar_prefetch = 0 : i64, scratch_operands = 1 : i64, tpu.core_type = #tpu.core_type<tc>, window_params = [{transform_indices = @transform_0, window_bounds = array<i64: 32, 16>}, {pipeline_mode = #tpu.pipeline_mode<synchronous>, transform_indices = @transform_1, window_bounds = array<i64: 16, 128>}, {transform_indices = @transform_2, window_bounds = array<i64: 1, 48, 16>}, {transform_indices = @transform_3, window_bounds = array<i64: 1, 3, 32, 128>}]} {
    %c0_i32 = arith.constant 0 : i32
    %0 = arith.cmpi eq, %arg1, %c0_i32 : i32
    %1 = arith.extui %0 : i1 to i32
    %c0_i32_0 = arith.constant 0 : i32
    %2 = arith.cmpi ne, %1, %c0_i32_0 : i32
    scf.if %2 {
      %c0_18 = arith.constant 0 : index
      %c0_19 = arith.constant 0 : index
      %c0_20 = arith.constant 0 : index
      %19 = vector.load %arg4[%c0_18, %c0_19, %c0_20] : memref<1x48x16xf32, #tpu.memory_space<vmem>>, vector<1x48x16xf32>
      %20 = vector.shape_cast %19 : vector<1x48x16xf32> to vector<48x16xf32>
      %c0_21 = arith.constant 0 : index
      %c0_22 = arith.constant 0 : index
      %21 = vector.load %arg3[%c0_21, %c0_22] : memref<16x128xf32, #tpu.memory_space<vmem>>, vector<16x128xf32>
      %cst_23 = arith.constant dense<0.000000e+00> : vector<48x128xf32>
      %22 = tpu.matmul %20, %21, %cst_23 {dimension_numbers = #tpu.dot_dimension_numbers<[1], [0], [0], [1], [0, 0, 1, 1], [], []>} : vector<48x16xf32>, vector<16x128xf32>, vector<48x128xf32> -> vector<48x128xf32>
      %c0_24 = arith.constant 0 : index
      %c0_25 = arith.constant 0 : index
      %23 = vector.load %arg6[%c0_24, %c0_25] : memref<48x128xf32, #tpu.memory_space<vmem>>, vector<48x128xf32>
      tpu.vector_store %arg6[%c0_24, %c0_25], %22 {strides = array<i32>} : memref<48x128xf32, #tpu.memory_space<vmem>>, vector<48x128xf32>,
    } else {
    }
    %c0 = arith.constant 0 : index
    %c0_1 = arith.constant 0 : index
    %3 = vector.load %arg2[%c0, %c0_1] : memref<32x16xf32, #tpu.memory_space<vmem>>, vector<32x16xf32>
    %c0_2 = arith.constant 0 : index
    %c0_3 = arith.constant 0 : index
    %4 = vector.load %arg6[%c0_2, %c0_3] : memref<48x128xf32, #tpu.memory_space<vmem>>, vector<16x128xf32>
    %cst = arith.constant dense<0.000000e+00> : vector<32x128xf32>
    %5 = tpu.matmul %3, %4, %cst {dimension_numbers = #tpu.dot_dimension_numbers<[1], [0], [0], [1], [0, 0, 1, 1], [], []>} : vector<32x16xf32>, vector<16x128xf32>, vector<32x128xf32> -> vector<32x128xf32>
    %c0_4 = arith.constant 0 : index
    %c0_5 = arith.constant 0 : index
    %c0_6 = arith.constant 0 : index
    %c0_7 = arith.constant 0 : index
    %6 = vector.load %arg5[%c0_4, %c0_5, %c0_6, %c0_7] : memref<1x3x32x128xf32, #tpu.memory_space<vmem>>, vector<1x1x32x128xf32>
    %7 = vector.shape_cast %6 : vector<1x1x32x128xf32> to vector<32x128xf32>
    %8 = vector.shape_cast %5 : vector<32x128xf32> to vector<1x1x32x128xf32>
    tpu.vector_store %arg5[%c0_4, %c0_5, %c0_6, %c0_7], %8 {strides = array<i32>} : memref<1x3x32x128xf32, #tpu.memory_space<vmem>>, vector<1x1x32x128xf32>,
    %c16 = arith.constant 16 : index
    %c0_8 = arith.constant 0 : index
    %9 = vector.load %arg6[%c16, %c0_8] : memref<48x128xf32, #tpu.memory_space<vmem>>, vector<16x128xf32>
    %cst_9 = arith.constant dense<0.000000e+00> : vector<32x128xf32>
    %10 = tpu.matmul %3, %9, %cst_9 {dimension_numbers = #tpu.dot_dimension_numbers<[1], [0], [0], [1], [0, 0, 1, 1], [], []>} : vector<32x16xf32>, vector<16x128xf32>, vector<32x128xf32> -> vector<32x128xf32>
    %c0_10 = arith.constant 0 : index
    %c1 = arith.constant 1 : index
    %c0_11 = arith.constant 0 : index
    %c0_12 = arith.constant 0 : index
    %11 = vector.load %arg5[%c0_10, %c1, %c0_11, %c0_12] : memref<1x3x32x128xf32, #tpu.memory_space<vmem>>, vector<1x1x32x128xf32>
    %12 = vector.shape_cast %11 : vector<1x1x32x128xf32> to vector<32x128xf32>
    %13 = vector.shape_cast %10 : vector<32x128xf32> to vector<1x1x32x128xf32>
    tpu.vector_store %arg5[%c0_10, %c1, %c0_11, %c0_12], %13 {strides = array<i32>} : memref<1x3x32x128xf32, #tpu.memory_space<vmem>>, vector<1x1x32x128xf32>,
    %c32 = arith.constant 32 : index
    %c0_13 = arith.constant 0 : index
    %14 = vector.load %arg6[%c32, %c0_13] : memref<48x128xf32, #tpu.memory_space<vmem>>, vector<16x128xf32>
    %cst_14 = arith.constant dense<0.000000e+00> : vector<32x128xf32>
    %15 = tpu.matmul %3, %14, %cst_14 {dimension_numbers = #tpu.dot_dimension_numbers<[1], [0], [0], [1], [0, 0, 1, 1], [], []>} : vector<32x16xf32>, vector<16x128xf32>, vector<32x128xf32> -> vector<32x128xf32>
    %c0_15 = arith.constant 0 : index
    %c2 = arith.constant 2 : index
    %c0_16 = arith.constant 0 : index
    %c0_17 = arith.constant 0 : index
    %16 = vector.load %arg5[%c0_15, %c2, %c0_16, %c0_17] : memref<1x3x32x128xf32, #tpu.memory_space<vmem>>, vector<1x1x32x128xf32>
    %17 = vector.shape_cast %16 : vector<1x1x32x128xf32> to vector<32x128xf32>
    %18 = vector.shape_cast %15 : vector<32x128xf32> to vector<1x1x32x128xf32>
    tpu.vector_store %arg5[%c0_15, %c2, %c0_16, %c0_17], %18 {strides = array<i32>} : memref<1x3x32x128xf32, #tpu.memory_space<vmem>>, vector<1x1x32x128xf32>,
    return
  }
  func.func @transform_0(%arg0: i32, %arg1: i32) -> (i32, i32) {
    %c0_i32 = arith.constant 0 : i32
    %c0_i32_0 = arith.constant 0 : i32
    return %arg1, %c0_i32 : i32, i32
  }
  func.func @transform_1(%arg0: i32, %arg1: i32) -> (i32, i32) {
    %c0_i32 = arith.constant 0 : i32
    %c0_i32_0 = arith.constant 0 : i32
    %c0_i32_1 = arith.constant 0 : i32
    return %c0_i32, %c0_i32_0 : i32, i32
  }
  func.func @transform_2(%arg0: i32, %arg1: i32) -> (i32, i32, i32) {
    %c0_i32 = arith.constant 0 : i32
    %c0_i32_0 = arith.constant 0 : i32
    %c0_i32_1 = arith.constant 0 : i32
    return %arg0, %c0_i32, %c0_i32_0 : i32, i32, i32
  }
  func.func @transform_3(%arg0: i32, %arg1: i32) -> (i32, i32, i32, i32) {
    %c0_i32 = arith.constant 0 : i32
    %c0_i32_0 = arith.constant 0 : i32
    %c0_i32_1 = arith.constant 0 : i32
    return %arg0, %c0_i32, %arg1, %c0_i32_0 : i32, i32, i32, i32
  }
}

</mosaic_0001>

<llo_original>
// kernel: tpu_custom_call.1
$region0: #{tpu_custom_call.1}
  #allocation0 [shape = 'u32[]', space=smem, size = 0x4, offset = 0x4, fixed_abs, tag = 'smem constant byte address 0x4 - core index']
  #allocation1 [shape = 'u32[72,128]{1,0:T(1,128)}', space=vmem, size = 0x9000, scoped, tag = 'internal scratch']
  #allocation2 [shape = 'f32[48,128]{1,0:T(8,128)}', space=vmem, size = 0x6000, scoped, tag = 'scratch operand']
  %s0 = inlined_call_operand.vmem [shape: f32[32,16], index: 0, kind: input, shape index: {}]
  %s1 = inlined_call_operand.vmem [shape: f32[16,128], index: 1, kind: input, shape index: {}]
  %s2 = inlined_call_operand.vmem [shape: f32[2,48,16], index: 2, kind: input, shape index: {}]
  %s3 = inlined_call_operand.hbm [shape: f32[2,3,32,128], index: 3, kind: output, shape index: {}]
  %s4 = sld [smem:[#allocation0]]
  $region49: #{tpu_custom_call.1} parent=0
    _
  %s6 = ssub.s32 1, %s4
  %s7 = scalar_select 0, %s6, %s4
  $region1: #{tpu_custom_call.1} parent=0
    #allocation3 [shape = 'u8[98304]{0}', space=vmem, size = 0x18000, scoped, tag = 'output window, operand 0']
    #allocation4 [shape = 's32[2]{0}', space=sflag, size = 0x8, scoped, tag = 'scoped memory for tpu_custom_call.1']
    %8 = vsyncpa [#allocation4], 0
    %s9 = scalar_lea.sflag [#allocation4], 1
    %10 = vsyncpa %s9, 0
    loop: start=0, step=1, limit=4
    $region2: #{tpu_custom_call.1} parent=1 // loop_pre_header
      _
    $region3: #{tpu_custom_call.1} parent=1 // loop_header
      %s12 = sphi 0, %s16
      %p13 = scmp.ge.s32.totalorder %s12, 4
      %s19 = sphi 0, %s31
      %s20 = sphi 0, %s27
      %s21 = sphi 0, %s19
      %s22 = sphi 0, %s20
      %s23 = sphi 0, %s21
      %s24 = sphi 0, %s22
      %s34 = sphi 0, %s36
      %s37 = sphi 0, %s34
      %s38 = sphi 0, %s37
      %s54 = sphi 0, %s38
      %s58 = sphi 0, %s58
      %s60 = sphi 0, %s58
      %s61 = sphi 0, %s60
      %s75 = sphi 0, %s61
      %s81 = sphi 0, %s83
      %s84 = sphi 0, %s81
      %s85 = sphi 0, %s84
      %s101 = sphi 0, %s85
      %s109 = sphi 0, %s111
      %s112 = sphi 0, %s109
      %s113 = sphi 0, %s112
      %s129 = sphi 0, %s113
    $region4: #{tpu_custom_call.1} parent=1 // loop_header_branch
      %15 = sbr.rel (%p13) target = $region8
    $region5: #{tpu_custom_call.1} parent=1 // loop_body
      %s17 = ssub.s32 %s12, 1
      %s18 = ssub.s32 %s12, 2
      %s25 = sadd.s32 1, %s20
      %p26 = scmp.ge.s32.totalorder %s25, 1
      %s27 = scalar_select %p26, 0, %s25
      %s28 = sadd.s32 1, %s19
      %s29 = scalar_select %p26, %s28, %s19
      %p30 = scmp.ge.s32.totalorder %s29, 2
      %s31 = scalar_select %p30, 0, %s29
      %s32 = ssub.s32 %s20, %s27
      %p33 = scmp.eq.s32.totalorder %s32, 0
      %s35 = sadd.s32 %s34, 1
      %s36 = scalar_select %p33, %s34, %s35
      %p39 = pneg %p33
      %p40 = scmp.eq.s32.totalorder %s12, 1
      %p41 = por %p39, %p40
      %p42 = scmp.ne.s32.totalorder %s34, %s37
      %p43 = scmp.eq.s32.totalorder %s12, 0
      %p44 = por %p42, %p43
      %p45 = scmp.ne.s32.totalorder %s34, %s37
      %p46 = scmp.eq.s32.totalorder %s17, 1
      %p47 = por %p45, %p46
      %p48 = scmp.ne.s32.totalorder %s37, %s38
      %p49 = scmp.eq.s32.totalorder %s17, 0
      %p50 = por %p48, %p49
      %p51 = scmp.ne.s32.totalorder %s37, %s38
      %p52 = scmp.eq.s32.totalorder %s18, 1
      %p53 = por %p51, %p52
      %p55 = scmp.ne.s32.totalorder %s38, %s54
      %p56 = scmp.eq.s32.totalorder %s18, 0
      %p57 = por %p55, %p56
      %s59 = sadd.s32 %s58, 1
      %p62 = scmp.eq.s32.totalorder %s12, 1
      %p63 = scmp.ne.s32.totalorder %s58, %s60
      %p64 = scmp.eq.s32.totalorder %s12, 0
      %p65 = por %p63, %p64
      %p66 = scmp.ne.s32.totalorder %s58, %s60
      %p67 = scmp.eq.s32.totalorder %s17, 1
      %p68 = por %p66, %p67
      %p69 = scmp.ne.s32.totalorder %s60, %s61
      %p70 = scmp.eq.s32.totalorder %s17, 0
      %p71 = por %p69, %p70
      %p72 = scmp.ne.s32.totalorder %s60, %s61
      %p73 = scmp.eq.s32.totalorder %s18, 1
      %p74 = por %p72, %p73
      %p76 = scmp.ne.s32.totalorder %s61, %s75
      %p77 = scmp.eq.s32.totalorder %s18, 0
      %p78 = por %p76, %p77
      %s79 = ssub.s32 %s19, %s31
      %p80 = scmp.eq.s32.totalorder %s79, 0
      %s82 = sadd.s32 %s81, 1
      %s83 = scalar_select %p80, %s81, %s82
      %p86 = pneg %p80
      %p87 = scmp.eq.s32.totalorder %s12, 1
      %p88 = por %p86, %p87
      %p89 = scmp.ne.s32.totalorder %s81, %s84
      %p90 = scmp.eq.s32.totalorder %s12, 0
      %p91 = por %p89, %p90
      %p92 = scmp.ne.s32.totalorder %s81, %s84
      %p93 = scmp.eq.s32.totalorder %s17, 1
      %p94 = por %p92, %p93
      %p95 = scmp.ne.s32.totalorder %s84, %s85
      %p96 = scmp.eq.s32.totalorder %s17, 0
      %p97 = por %p95, %p96
      %p98 = scmp.ne.s32.totalorder %s84, %s85
      %p99 = scmp.eq.s32.totalorder %s18, 1
      %p100 = por %p98, %p99
      %p102 = scmp.ne.s32.totalorder %s85, %s101
      %p103 = scmp.eq.s32.totalorder %s18, 0
      %p104 = por %p102, %p103
      %s105 = ssub.s32 %s19, %s31
      %s106 = ssub.s32 %s20, %s27
      %s107 = sor.u32 %s105, %s106
      %p108 = scmp.eq.s32.totalorder %s107, 0
      %s110 = sadd.s32 %s109, 1
      %s111 = scalar_select %p108, %s109, %s110
      %p114 = pneg %p108
      %p115 = scmp.eq.s32.totalorder %s12, 1
      %p116 = por %p114, %p115
      %p117 = scmp.ne.s32.totalorder %s109, %s112
      %p118 = scmp.eq.s32.totalorder %s12, 0
      %p119 = por %p117, %p118
      %p120 = scmp.ne.s32.totalorder %s109, %s112
      %p121 = scmp.eq.s32.totalorder %s17, 1
      %p122 = por %p120, %p121
      %p123 = scmp.ne.s32.totalorder %s112, %s113
      %p124 = scmp.eq.s32.totalorder %s17, 0
      %p125 = por %p123, %p124
      %p126 = scmp.ne.s32.totalorder %s112, %s113
      %p127 = scmp.eq.s32.totalorder %s18, 1
      %p128 = por %p126, %p127
      %p130 = scmp.ne.s32.totalorder %s113, %s129
      %p131 = scmp.eq.s32.totalorder %s18, 0
      %p132 = por %p130, %p131
      %p133 = scmp.le.s32.totalorder 1, %s12
      %p134 = scmp.lt.s32.totalorder %s12, 3
      %p135 = pnand %p133, %p134
      %p136 = pneg %p135
      // Predicated region
      $region9: #{tpu_custom_call.1} parent=5 // pred_check
        _
      $region10: #{tpu_custom_call.1} parent=5 // pred_check_branch
        %138 = sbr.rel (%p135) target = $region12
      $region11: #{tpu_custom_call.1} parent=5 // pred_region
        %s139 = ssub.s32 %s12, 1
        // Predicated region
        $region13: #{tpu_custom_call.1} parent=11 // pred_check
          %p140 = pneg %p50
        $region14: #{tpu_custom_call.1} parent=11 // pred_check_branch
          %142 = sbr.rel (%p140) target = $region16
        $region15: #{tpu_custom_call.1} parent=11 // pred_region
          %s143 = smul.u32 4, %s22
          %p144 = scmp.lt.s32.totalorder %s143, 3
          %s145 = scalar_select %p144, %s143, 3
          %s146 = smul.addr %s145, 8
          %s147 = scalar_lea.vmem %s0, %s146
          %s148 = smul.u32 4, %s22
        $region16: #{tpu_custom_call.1} parent=11 // pred_fallthru
          _
        // Predicated region
        $region17: #{tpu_custom_call.1} parent=11 // pred_check
          %p149 = pneg %p71
        $region18: #{tpu_custom_call.1} parent=11 // pred_check_branch
          %151 = sbr.rel (%p149) target = $region20
        $region19: #{tpu_custom_call.1} parent=11 // pred_region
          _
        $region20: #{tpu_custom_call.1} parent=11 // pred_fallthru
          _
      $region12: #{tpu_custom_call.1} parent=5 // pred_fallthru
        _
      %p152 = scmp.lt.s32.totalorder %s12, 2
      // Predicated region
      $region21: #{tpu_custom_call.1} parent=5 // pred_check
        %p153 = pneg %p152
      $region22: #{tpu_custom_call.1} parent=5 // pred_check_branch
        %155 = sbr.rel (%p153) target = $region24
      $region23: #{tpu_custom_call.1} parent=5 // pred_region
        // Predicated region
        $region25: #{tpu_custom_call.1} parent=23 // pred_check
          %p156 = pneg %p91
        $region26: #{tpu_custom_call.1} parent=23 // pred_check_branch
          %158 = sbr.rel (%p156) target = $region28
        $region27: #{tpu_custom_call.1} parent=23 // pred_region
          %p159 = scmp.lt.s32.totalorder %s19, 1
          %s160 = scalar_select %p159, %s19, 1
          %s161 = smul.addr %s160, 6
          %s162 = smul.addr %s161, 8
          %s163 = scalar_lea.vmem %s2, %s162
        $region28: #{tpu_custom_call.1} parent=23 // pred_fallthru
          _
      $region24: #{tpu_custom_call.1} parent=5 // pred_fallthru
        _
      %p164 = scmp.le.s32.totalorder 1, %s12
      %p165 = scmp.lt.s32.totalorder %s12, 3
      %p166 = pnand %p164, %p165
      %p167 = pneg %p166
      // Predicated region
      $region29: #{tpu_custom_call.1} parent=5 // pred_check
        _
      $region30: #{tpu_custom_call.1} parent=5 // pred_check_branch
        %169 = sbr.rel (%p166) target = $region32
      $region31: #{tpu_custom_call.1} parent=5 // pred_region
        %s170 = ssub.s32 %s12, 1
        %s171 = smul.u32 4, %s22
        %p172 = scmp.lt.s32.totalorder %s171, 3
        %s173 = scalar_select %p172, %s171, 3
        %s174 = smul.addr %s173, 8
        %s175 = scalar_lea.vmem %s0, %s174
        %p176 = pneg %p50
        %p177 = pneg %p47
        %p178 = pneg %p71
        %p179 = pneg %p68
        %p180 = scmp.lt.s32.totalorder %s21, 1
        %s181 = scalar_select %p180, %s21, 1
        %s182 = smul.addr %s181, 6
        %s183 = smul.addr %s182, 8
        %s184 = scalar_lea.vmem %s2, %s183
        %p185 = pneg %p97
        %p186 = pneg %p94
        %p187 = pneg %p125
        %p188 = pneg %p122
        %s189 = sand.u32 %s112, 1
        %s190 = scalar_lea.sflag [#allocation4], %s189
        %s191 = sand.u32 %s112, 1
        %s192 = smul.addr %s191, 96
        %s193 = scalar_lea.vmem [#allocation3], %s192
        %s194 = smul.u32 4, %s22
        %p195 = scmp.lt.s32.totalorder %s194, 3
        %s196 = scalar_select %p195, %s194, 3
        %s197 = smul.addr %s196, 8
        %s198 = scalar_lea.vmem %s0, %s197
        %s199 = smul.u32 4, %s22
        %p200 = scmp.lt.s32.totalorder %s21, 1
        %s201 = scalar_select %p200, %s21, 1
        %s202 = smul.addr %s201, 6
        %s203 = smul.addr %s202, 8
        %s204 = scalar_lea.vmem %s2, %s203
        %s205 = smul.u32 4, %s22
        %p206 = scmp.eq.s32.totalorder %s22, 0
        // Predicated region
        $region33: #{tpu_custom_call.1} parent=31 // pred_check
          %p207 = pneg %p206
        $region34: #{tpu_custom_call.1} parent=31 // pred_check_branch
          %209 = sbr.rel (%p207) target = $region36
        $region35: #{tpu_custom_call.1} parent=31 // pred_region
          %v210 = vld [vmem:[%s204] sm:$0xff]
          %v211 = vld [vmem:[%s204 + $0x8] sm:$0xff]
          %v212 = vld [vmem:[%s204 + $0x10] sm:$0xff]
          %v213 = vld [vmem:[%s204 + $0x18] sm:$0xff]
          %v214 = vld [vmem:[%s204 + $0x20] sm:$0xff]
          %v215 = vld [vmem:[%s204 + $0x28] sm:$0xff]
          %v216 = vld [vmem:[%s1] sm:$0xff]
          %v217 = vld [vmem:[%s1 + $0x8] sm:$0xff]
          %vm218 = vcmask 130048
          %v220 = vsel %vm218, %v210, 0
          %v223 = vsel %vm218, %v211, 0
          %v226 = vsel %vm218, %v212, 0
          %v229 = vsel %vm218, %v213, 0
          %v232 = vsel %vm218, %v214, 0
          %v235 = vsel %vm218, %v215, 0
          %237 = vmatpush.msra.mxu0 0.0
          %238 = vmatpush.msra.mxu0 0.0
          %239 = vmatpush.msra.mxu0 0.0
          %240 = vmatpush.msra.mxu0 0.0
          %241 = vmatpush.msra.mxu0 0.0
          %242 = vmatpush.msra.mxu0 0.0
          %243 = vmatpush.msra.mxu0 0.0
          %244 = vmatpush.msra.mxu0 0.0
          %245 = vmatpush.msra.mxu0 0.0
          %246 = vmatpush.msra.mxu0 0.0
          %247 = vmatpush.msra.mxu0 0.0
          %248 = vmatpush.msra.mxu0 0.0
          %249 = vmatpush.msra.mxu0 0.0
          %250 = vmatpush.msra.mxu0 0.0
          %251 = vmatpush.msra.mxu0 %v217
          %252 = vmatpush.msra.mxu0 %v216
          %253 = vmatmul.f32.gmra.mxu0 %v220
          %v254 = vpop.f32.mrf.mxu0
          %v255 = vadd.f32 0.0, %v254
          %256 = vmatmul.f32.gmra.mxu0 %v223
          %v257 = vpop.f32.mrf.mxu0
          %v258 = vadd.f32 0.0, %v257
          %259 = vmatmul.f32.gmra.mxu0 %v226
          %v260 = vpop.f32.mrf.mxu0
          %v261 = vadd.f32 0.0, %v260
          %262 = vmatmul.f32.gmra.mxu0 %v229
          %v263 = vpop.f32.mrf.mxu0
          %v264 = vadd.f32 0.0, %v263
          %265 = vmatmul.f32.gmra.mxu0 %v232
          %v266 = vpop.f32.mrf.mxu0
          %v267 = vadd.f32 0.0, %v266
          %268 = vmatmul.f32.gmra.mxu0 %v235
          %v269 = vpop.f32.mrf.mxu0
          %v270 = vadd.f32 0.0, %v269
          %271 = vdwg.mxu0
          %272 = vst [vmem:[#allocation2] sm:$0xff] %v255
          %273 = vst [vmem:[#allocation2 + $0x8] sm:$0xff] %v258
          %274 = vst [vmem:[#allocation2 + $0x10] sm:$0xff] %v261
          %275 = vst [vmem:[#allocation2 + $0x18] sm:$0xff] %v264
          %276 = vst [vmem:[#allocation2 + $0x20] sm:$0xff] %v267
          %277 = vst [vmem:[#allocation2 + $0x28] sm:$0xff] %v270
        $region36: #{tpu_custom_call.1} parent=31 // pred_fallthru
          _
        %v278 = vld [vmem:[%s198] sm:$0xff]
        %v279 = vld [vmem:[%s198 + $0x8] sm:$0xff]
        %v280 = vld [vmem:[%s198 + $0x10] sm:$0xff]
        %v281 = vld [vmem:[%s198 + $0x18] sm:$0xff]
        %v282 = vld [vmem:[#allocation2] sm:$0xff]
        %v283 = vld [vmem:[#allocation2 + $0x8] sm:$0xff]
        %vm284 = vcmask 130048
        %v286 = vsel %vm284, %v278, 0
        %v289 = vsel %vm284, %v279, 0
        %v292 = vsel %vm284, %v280, 0
        %v295 = vsel %vm284, %v281, 0
        %297 = vmatpush.msra.mxu0 0.0
        %298 = vmatpush.msra.mxu0 0.0
        %299 = vmatpush.msra.mxu0 0.0
        %300 = vmatpush.msra.mxu0 0.0
        %301 = vmatpush.msra.mxu0 0.0
        %302 = vmatpush.msra.mxu0 0.0
        %303 = vmatpush.msra.mxu0 0.0
        %304 = vmatpush.msra.mxu0 0.0
        %305 = vmatpush.msra.mxu0 0.0
        %306 = vmatpush.msra.mxu0 0.0
        %307 = vmatpush.msra.mxu0 0.0
        %308 = vmatpush.msra.mxu0 0.0
        %309 = vmatpush.msra.mxu0 0.0
        %310 = vmatpush.msra.mxu0 0.0
        %311 = vmatpush.msra.mxu0 %v283
        %312 = vmatpush.msra.mxu0 %v282
        %313 = vmatmul.f32.gmra.mxu0 %v286
        %v314 = vpop.f32.mrf.mxu0
        %v315 = vadd.f32 0.0, %v314
        %316 = vmatmul.f32.gmra.mxu0 %v289
        %v317 = vpop.f32.mrf.mxu0
        %v318 = vadd.f32 0.0, %v317
        %319 = vmatmul.f32.gmra.mxu0 %v292
        %v320 = vpop.f32.mrf.mxu0
        %v321 = vadd.f32 0.0, %v320
        %322 = vmatmul.f32.gmra.mxu0 %v295
        %v323 = vpop.f32.mrf.mxu0
        %v324 = vadd.f32 0.0, %v323
        %325 = vdwg.mxu0
        %326 = vst [vmem:[%s193] sm:$0xff] %v315
        %327 = vst [vmem:[%s193 + $0x8] sm:$0xff] %v318
        %328 = vst [vmem:[%s193 + $0x10] sm:$0xff] %v321
        %329 = vst [vmem:[%s193 + $0x18] sm:$0xff] %v324
        %v330 = vld [vmem:[#allocation2 + $0x10] sm:$0xff]
        %v331 = vld [vmem:[#allocation2 + $0x18] sm:$0xff]
        %332 = vmatpush.msra.mxu0 0.0
        %333 = vmatpush.msra.mxu0 0.0
        %334 = vmatpush.msra.mxu0 0.0
        %335 = vmatpush.msra.mxu0 0.0
        %336 = vmatpush.msra.mxu0 0.0
        %337 = vmatpush.msra.mxu0 0.0
        %338 = vmatpush.msra.mxu0 0.0
        %339 = vmatpush.msra.mxu0 0.0
        %340 = vmatpush.msra.mxu0 0.0
        %341 = vmatpush.msra.mxu0 0.0
        %342 = vmatpush.msra.mxu0 0.0
        %343 = vmatpush.msra.mxu0 0.0
        %344 = vmatpush.msra.mxu0 0.0
        %345 = vmatpush.msra.mxu0 0.0
        %346 = vmatpush.msra.mxu0 %v331
        %347 = vmatpush.msra.mxu0 %v330
        %348 = vmatmul.f32.gmra.mxu0 %v286
        %v349 = vpop.f32.mrf.mxu0
        %v350 = vadd.f32 0.0, %v349
        %351 = vmatmul.f32.gmra.mxu0 %v289
        %v352 = vpop.f32.mrf.mxu0
        %v353 = vadd.f32 0.0, %v352
        %354 = vmatmul.f32.gmra.mxu0 %v292
        %v355 = vpop.f32.mrf.mxu0
        %v356 = vadd.f32 0.0, %v355
        %357 = vmatmul.f32.gmra.mxu0 %v295
        %v358 = vpop.f32.mrf.mxu0
        %v359 = vadd.f32 0.0, %v358
        %360 = vdwg.mxu0
        %s361 = scalar_lea.vmem %s193, 32 [#allocation3]
        %362 = vst [vmem:[%s361] sm:$0xff] %v350
        %363 = vst [vmem:[%s361 + $0x8] sm:$0xff] %v353
        %364 = vst [vmem:[%s361 + $0x10] sm:$0xff] %v356
        %365 = vst [vmem:[%s361 + $0x18] sm:$0xff] %v359
        %v366 = vld [vmem:[#allocation2 + $0x20] sm:$0xff]
        %v367 = vld [vmem:[#allocation2 + $0x28] sm:$0xff]
        %368 = vmatpush.msra.mxu0 0.0
        %369 = vmatpush.msra.mxu0 0.0
        %370 = vmatpush.msra.mxu0 0.0
        %371 = vmatpush.msra.mxu0 0.0
        %372 = vmatpush.msra.mxu0 0.0
        %373 = vmatpush.msra.mxu0 0.0
        %374 = vmatpush.msra.mxu0 0.0
        %375 = vmatpush.msra.mxu0 0.0
        %376 = vmatpush.msra.mxu0 0.0
        %377 = vmatpush.msra.mxu0 0.0
        %378 = vmatpush.msra.mxu0 0.0
        %379 = vmatpush.msra.mxu0 0.0
        %380 = vmatpush.msra.mxu0 0.0
        %381 = vmatpush.msra.mxu0 0.0
        %382 = vmatpush.msra.mxu0 %v367
        %383 = vmatpush.msra.mxu0 %v366
        %384 = vmatmul.f32.gmra.mxu0 %v286
        %v385 = vpop.f32.mrf.mxu0
        %v386 = vadd.f32 0.0, %v385
        %387 = vmatmul.f32.gmra.mxu0 %v289
        %v388 = vpop.f32.mrf.mxu0
        %v389 = vadd.f32 0.0, %v388
        %390 = vmatmul.f32.gmra.mxu0 %v292
        %v391 = vpop.f32.mrf.mxu0
        %v392 = vadd.f32 0.0, %v391
        %393 = vmatmul.f32.gmra.mxu0 %v295
        %v394 = vpop.f32.mrf.mxu0
        %v395 = vadd.f32 0.0, %v394
        %396 = vdwg.mxu0
        %s397 = scalar_lea.vmem %s193, 64 [#allocation3]
        %398 = vst [vmem:[%s397] sm:$0xff] %v386
        %399 = vst [vmem:[%s397 + $0x8] sm:$0xff] %v389
        %400 = vst [vmem:[%s397 + $0x10] sm:$0xff] %v392
        %401 = vst [vmem:[%s397 + $0x18] sm:$0xff] %v395
        %s402 = sand.u32 %s112, 1
        %s403 = scalar_lea.sflag [#allocation4], %s402
        %s404 = sand.u32 %s112, 1
        %s405 = smul.addr %s404, 96
        %s406 = scalar_lea.vmem [#allocation3], %s405
        // Predicated region
        $region37: #{tpu_custom_call.1} parent=31 // pred_check
          %p407 = pneg %p122
        $region38: #{tpu_custom_call.1} parent=31 // pred_check_branch
          %409 = sbr.rel (%p407) target = $region40
        $region39: #{tpu_custom_call.1} parent=31 // pred_region
          %s410 = smul.u32 4, %s22
          %412 = vsyncadd %s403, 0
          %s413 = smul.addr %s21, 12
          %s414 = sadd.s32 %s410, %s413
          %s415 = smul.addr %s414, 8
          %s416 = scalar_lea.hbm %s3, %s415
          %s417 = sshll.u32 %s406, 4
          %s418 = int_to_ptr.vmem [resolvable:$true] %s417
          %s419 = sshll.u32 %s416, 4
          %s420 = int_to_ptr.hbm [resolvable:$true] %s419
          %425 = dma.vmem_to_hbm [thread:$0]  %s418, 1536, %s420, %s403, 128, 128, 8
        $region40: #{tpu_custom_call.1} parent=31 // pred_fallthru
          _
      $region32: #{tpu_custom_call.1} parent=5 // pred_fallthru
        _
      %p426 = scmp.le.s32.totalorder 2, %s12
      // Predicated region
      $region41: #{tpu_custom_call.1} parent=5 // pred_check
        %p427 = pneg %p426
      $region42: #{tpu_custom_call.1} parent=5 // pred_check_branch
        %429 = sbr.rel (%p427) target = $region44
      $region43: #{tpu_custom_call.1} parent=5 // pred_region
        %s430 = ssub.s32 %s12, 2
        // Predicated region
        $region45: #{tpu_custom_call.1} parent=43 // pred_check
          %p431 = pneg %p128
        $region46: #{tpu_custom_call.1} parent=43 // pred_check_branch
          %433 = sbr.rel (%p431) target = $region48
        $region47: #{tpu_custom_call.1} parent=43 // pred_region
          %s434 = sand.u32 %s113, 1
          %s435 = scalar_lea.sflag [#allocation4], %s434
          %s436 = sand.u32 %s113, 1
          %s437 = smul.addr %s436, 96
          %s438 = scalar_lea.vmem [#allocation3], %s437
          %440 = dma.done %s435, 1536
        $region48: #{tpu_custom_call.1} parent=43 // pred_fallthru
          _
      $region44: #{tpu_custom_call.1} parent=5 // pred_fallthru
        _
    $region6: #{tpu_custom_call.1} parent=1 // loop_footer
      %s16 = sadd.s32 1, %s12
    $region7: #{tpu_custom_call.1} parent=1 // loop_footer_branch
      %11 = sbr.rel target = $region3
    $region8: #{tpu_custom_call.1} parent=1 // loop_exit
      _
    %441 = vsyncpa [#allocation4], 1
    %s442 = scalar_lea.sflag [#allocation4], 1
    %443 = vsyncpa %s442, 1

</llo_original>
